<compile_context>
chip_gen: v7x
topology: tpu7x:2x2x1
jax: 0.10.0
libtpu: 0.0.40
codegen_flags: <defaults>
</compile_context>

<pallas_src>
import jax
import jax.numpy as jnp
from jax.experimental import pallas as pl
from jax.experimental.pallas import tpu as pltpu

_LANE = 128
_SUBLANE = 8
_MiB = 1024 * 1024


# ----------------------------------------------------------------------------
# Kernels
# ----------------------------------------------------------------------------
def _mean_kernel(scale_ref, seq_ref, out_ref, acc_ref):
    # scale_ref: SMEM (1,) f32 = 1 / N            (hoisted normalizer)
    # seq_ref  : (tb, tn, td) VMEM tile, native dtype
    # out_ref  : (tb, td)
    # acc_ref  : (tb, td) f32 scratch, persists across the seq-chunk axis
    k = pl.program_id(2)

    @pl.when(k == 0)
    def _():
        acc_ref[...] = jnp.zeros_like(acc_ref)

    # Widening is fused into the reduction: no standalone f32 copy of the tile.
    acc_ref[...] += jnp.sum(seq_ref[...], axis=1, dtype=jnp.float32)

    @pl.when(k == pl.num_programs(2) - 1)
    def _():
        out_ref[...] = (acc_ref[...] * scale_ref[0]).astype(out_ref.dtype)


def _masked_kernel(scale_ref, seq_ref, msk_ref, out_ref, acc_ref):
    # scale_ref: SMEM (1,) f32 = 1 / (N * sum(msk))   (hoisted normalizer)
    # seq_ref  : (tb, tn, td) VMEM tile, native dtype
    # msk_ref  : (tb, tn)     VMEM tile, same dtype as seq (tiny: tb*tn elems)
    # out_ref  : (tb, td)
    # acc_ref  : (tb, td) f32 scratch, persists across the seq-chunk axis
    k = pl.program_id(2)

    @pl.when(k == 0)
    def _():
        acc_ref[...] = jnp.zeros_like(acc_ref)

    seq = seq_ref[...]                       # (tb, tn, td), native dtype
    m = msk_ref[...][:, :, None]             # (tb, tn, 1), native dtype
    # Multiply in the native dtype (mask values are 0/1, exact in bf16);
    # widening to f32 happens inside the reduction.
    acc_ref[...] += jnp.sum(seq * m, axis=1, dtype=jnp.float32)

    @pl.when(k == pl.num_programs(2) - 1)
    def _():
        out_ref[...] = (acc_ref[...] * scale_ref[0]).astype(out_ref.dtype)


# ----------------------------------------------------------------------------
# VMEM budgeting / tile planning
# ----------------------------------------------------------------------------
def _vmem_limit_bytes():
    """Per-generation scoped-VMEM limit passed to the compiler."""
    phys = 0
    try:
        get_info = getattr(pltpu, "get_tpu_info", None)
        if get_info is not None:
            phys = int(getattr(get_info(), "vmem_capacity_bytes", 0))
    except Exception:
        phys = 0
    if phys and phys <= 64 * _MiB:   # v7x-class: 64 MiB physical per TensorCore
        return 44 * _MiB
    if phys:                         # v5e / v6e: 128 MiB physical
        return 96 * _MiB
    return 48 * _MiB                 # unknown: safe on every generation


def _divisor_tiles(dim, align):
    """Multiples of `align` that divide `dim`, descending (empty if none)."""
    if dim % align != 0:
        return []
    return [t for t in range(dim, 0, -align) if dim % t == 0]


def _plan_tiles(B, N, D, itemsize, vmem_limit):
    """Pick (tb, tn, td) from a byte budget instead of fixed magic sizes."""
    # One seq input buffer's budget.  The pipeline double-buffers it and the
    # kernel can materialize up to a few tile-sized temporaries (product /
    # widened-f32), so keep a single buffer at <= ~1/8 of the VMEM limit.
    seq_budget = max(vmem_limit // 8, 512 * 1024)

    td_cands = _divisor_tiles(D, _LANE) or [D]                    # descending
    tn_cands = _divisor_tiles(N, _LANE) or [N]                    # descending
    if B % _SUBLANE == 0:
        tb_cands = [t for t in (32, 16, 8) if B % t == 0] or [_SUBLANE]
    else:
        tb_cands = [B]                                            # B < 8 (full dim)

    tb = tb_cands[-1]
    tn_min = tn_cands[-1]

    # 1) largest td that fits with the minimal (tb, tn): keeps D contiguous
    #    (best DMA pattern) whenever the budget allows.
    td = td_cands[-1]
    for c in td_cands:
        if tb * tn_min * c * itemsize <= seq_budget:
            td = c
            break

    # 2) largest tn (reduction chunk) that fits: big per-step DMAs amortize
    #    the ~0.35us grid-step overhead.
    tn = tn_cands[-1]
    for c in tn_cands:
        if tb * c * td * itemsize <= seq_budget:
            tn = c
            break

    # 3) bump tb (fewer grid steps) if it still fits the budget and keeps at
    #    least two parallel blocks for megacore sharding.
    for c in tb_cands:
        n_parallel = (B // c) * (D // td)
        if c * tn * td * itemsize <= seq_budget and (n_parallel >= 2 or c == tb):
            tb = c
            break

    # 4) if there is still only one parallel block (small batch), split D so
    #    both TensorCores on v7x-class chips get work.
    if (B // tb) * (D // td) < 2 and D % (2 * _LANE) == 0:
        half = td // 2
        if half >= _LANE and half % _LANE == 0 and D % half == 0:
            td = half

    return tb, tn, td


# ----------------------------------------------------------------------------
# Wrapper
# ----------------------------------------------------------------------------
def readout(seq, msk=None):
    """Pallas TPU implementation of Readout.forward(seq, msk)."""
    orig_B, orig_N, D = seq.shape
    dtype = seq.dtype
    itemsize = dtype.itemsize
    vmem_limit = _vmem_limit_bytes()

    # Normalizer hoisted out of the kernel, from the ORIGINAL (unpadded)
    # arrays so padding below cannot change it.  If sum(msk) == 0 this is
    # inf/nan, exactly like the PyTorch module.
    if msk is None:
        scale = jnp.full((1,), 1.0 / orig_N, dtype=jnp.float32)
    else:
        total = jnp.sum(msk.astype(jnp.float32), dtype=jnp.float32)
        scale = jnp.reshape(1.0 / (orig_N * total), (1,)).astype(jnp.float32)
        # Mask travels in seq's dtype (0/1 values are exact in bf16): avoids a
        # 4x f32 mask copy through HBM for low-precision workloads.
        if msk.dtype != dtype:
            msk = msk.astype(dtype)

    # ---- zero-pad to legal, tileable shapes (contributes 0 to every sum) ----
    B, N = orig_B, orig_N
    if B > _SUBLANE and B % _SUBLANE != 0:
        pb = (-B) % _SUBLANE
        seq = jnp.pad(seq, ((0, pb), (0, 0), (0, 0)))
        if msk is not None:
            msk = jnp.pad(msk, ((0, pb), (0, 0)))
        B += pb
    if N > _LANE and N % _LANE != 0:
        pn = (-N) % _LANE
        seq = jnp.pad(seq, ((0, 0), (0, pn), (0, 0)))
        if msk is not None:
            msk = jnp.pad(msk, ((0, 0), (0, pn)))
        N += pn

    tb, tn, td = _plan_tiles(B, N, D, itemsize, vmem_limit)
    grid = (B // tb, D // td, N // tn)

    compiler_params = pltpu.CompilerParams(
        dimension_semantics=("parallel", "parallel", "arbitrary"),
        vmem_limit_bytes=vmem_limit,
    )

    seq_spec = pl.BlockSpec((tb, tn, td), lambda i, d, k, s: (i, k, d))
    out_spec = pl.BlockSpec((tb, td), lambda i, d, k, s: (i, d))
    out_shape = jax.ShapeDtypeStruct((B, D), dtype)
    scratch = [pltpu.VMEM((tb, td), jnp.float32)]

    if msk is None:
        grid_spec = pltpu.PrefetchScalarGridSpec(
            num_scalar_prefetch=1,
            grid=grid,
            in_specs=[seq_spec],
            out_specs=out_spec,
            scratch_shapes=scratch,
        )
        out = pl.pallas_call(
            _mean_kernel,
            out_shape=out_shape,
            grid_spec=grid_spec,
            compiler_params=compiler_params,
        )(scale, seq)
    else:
        msk_spec = pl.BlockSpec((tb, tn), lambda i, d, k, s: (i, k))
        grid_spec = pltpu.PrefetchScalarGridSpec(
            num_scalar_prefetch=1,
            grid=grid,
            in_specs=[seq_spec, msk_spec],
            out_specs=out_spec,
            scratch_shapes=scratch,
        )
        out = pl.pallas_call(
            _masked_kernel,
            out_shape=out_shape,
            grid_spec=grid_spec,
            compiler_params=compiler_params,
        )(scale, seq, msk)

    return out[:orig_B] if B != orig_B else out


# ----------------------------------------------------------------------------
# Pure-JAX reference (mirrors the PyTorch module exactly)
# ----------------------------------------------------------------------------
def _readout_ref(seq, msk=None):
    if msk is None:
        return jnp.mean(seq, axis=1)
    m = msk[..., None].astype(seq.dtype)
    return jnp.mean(seq * m, axis=1) / jnp.sum(m)


if __name__ == "__main__":
    key = jax.random.PRNGKey(0)
    k1, k2, k3, k4 = jax.random.split(key, 4)

    # --- small shapes: single-block path, f32 ---
    B, N, D = 2, 8, 32
    seq = jax.random.normal(k1, (B, N, D), dtype=jnp.float32)
    msk = (jax.random.uniform(k2, (B, N)) > 0.3).astype(jnp.float32)

    out_masked = readout(seq, msk)
    jax.block_until_ready(out_masked)
    out_plain = readout(seq, None)
    jax.block_until_ready(out_plain)

    assert out_masked.shape == (B, D) and out_plain.shape == (B, D)
    assert jnp.allclose(out_masked, _readout_ref(seq, msk), rtol=1e-5, atol=1e-5)
    assert jnp.allclose(out_plain, _readout_ref(seq, None), rtol=1e-5, atol=1e-5)

    # --- tiled (8,128)-aligned path + bf16 accumulation path (still small) ---
    B2, N2, D2 = 8, 256, 256
    seq2 = jax.random.normal(k3, (B2, N2, D2), dtype=jnp.bfloat16)
    msk2 = (jax.random.uniform(k4, (B2, N2)) > 0.5).astype(jnp.bfloat16)

    out2_m = readout(seq2, msk2)
    jax.block_until_ready(out2_m)
    out2_p = readout(seq2, None)
    jax.block_until_ready(out2_p)

    ref2_m = _readout_ref(seq2.astype(jnp.float32), msk2.astype(jnp.float32))
    ref2_p = _readout_ref(seq2.astype(jnp.float32), None)
    assert jnp.allclose(out2_m.astype(jnp.float32), ref2_m, rtol=2e-2, atol=1e-3)
    assert jnp.allclose(out2_p.astype(jnp.float32), ref2_p, rtol=2e-2, atol=1e-3)

    print("KERNEL_OK")
</pallas_src>

<mosaic_0001>
module attributes {stable_mosaic.version = 11 : i64} {
  func.func @_masked_kernel(%arg0: i32, %arg1: i32, %arg2: i32, %arg3: memref<1xf32, #tpu.memory_space<smem>>, %arg4: memref<2x8x32xf32, #tpu.memory_space<vmem>>, %arg5: memref<2x8xf32, #tpu.memory_space<vmem>>, %arg6: memref<2x32xf32, #tpu.memory_space<vmem>>, %arg7: memref<2x32xf32, #tpu.memory_space<vmem>>) attributes {dimension_semantics = [#tpu.dimension_semantics<parallel>, #tpu.dimension_semantics<parallel>, #tpu.dimension_semantics<arbitrary>], iteration_bounds = array<i64: 1, 1, 1>, scalar_prefetch = 1 : i64, scratch_operands = 1 : i64, tpu.core_type = #tpu.core_type<tc>, window_params = [{transform_indices = @transform_0, window_bounds = array<i64: 2, 8, 32>}, {transform_indices = @transform_1, window_bounds = array<i64: 2, 8>}, {transform_indices = @transform_2, window_bounds = array<i64: 2, 32>}]} {
    %c0_i32 = arith.constant 0 : i32
    %0 = arith.cmpi eq, %arg2, %c0_i32 : i32
    %1 = arith.extui %0 : i1 to i32
    %c0_i32_0 = arith.constant 0 : i32
    %2 = arith.cmpi ne, %1, %c0_i32_0 : i32
    scf.if %2 {
      %cst_11 = arith.constant 0.000000e+00 : f32
      %15 = vector.broadcast %cst_11 : f32 to vector<2x32xf32>
      %c0_12 = arith.constant 0 : index
      %c0_13 = arith.constant 0 : index
      %16 = vector.load %arg7[%c0_12, %c0_13] : memref<2x32xf32, #tpu.memory_space<vmem>>, vector<2x32xf32>
      tpu.vector_store %arg7[%c0_12, %c0_13], %15 {strides = array<i32>} : memref<2x32xf32, #tpu.memory_space<vmem>>, vector<2x32xf32>,
    } else {
    }
    %c0 = arith.constant 0 : index
    %c0_1 = arith.constant 0 : index
    %c0_2 = arith.constant 0 : index
    %3 = vector.load %arg4[%c0, %c0_1, %c0_2] : memref<2x8x32xf32, #tpu.memory_space<vmem>>, vector<2x8x32xf32>
    %c0_3 = arith.constant 0 : index
    %c0_4 = arith.constant 0 : index
    %4 = vector.load %arg5[%c0_3, %c0_4] : memref<2x8xf32, #tpu.memory_space<vmem>>, vector<2x8xf32>
    %5 = vector.shape_cast %4 : vector<2x8xf32> to vector<2x8x1xf32>
    %c0_5 = arith.constant 0 : index
    %c0_6 = arith.constant 0 : index
    %6 = vector.load %arg7[%c0_5, %c0_6] : memref<2x32xf32, #tpu.memory_space<vmem>>, vector<2x32xf32>
    %7 = vector.broadcast %5 : vector<2x8x1xf32> to vector<2x8x32xf32>
    %8 = arith.mulf %3, %7 : vector<2x8x32xf32>
    %cst = arith.constant dense<0.000000e+00> : vector<2x32xf32>
    %9 = vector.multi_reduction <add>, %8, %cst [1] : vector<2x8x32xf32> to vector<2x32xf32>
    %10 = arith.addf %6, %9 : vector<2x32xf32>
    %c0_7 = arith.constant 0 : index
    %c0_8 = arith.constant 0 : index
    %11 = vector.load %arg7[%c0_7, %c0_8] : memref<2x32xf32, #tpu.memory_space<vmem>>, vector<2x32xf32>
    tpu.vector_store %arg7[%c0_7, %c0_8], %10 {strides = array<i32>} : memref<2x32xf32, #tpu.memory_space<vmem>>, vector<2x32xf32>,
    %c0_i32_9 = arith.constant 0 : i32
    %12 = arith.cmpi eq, %arg2, %c0_i32_9 : i32
    %13 = arith.extui %12 : i1 to i32
    %c0_i32_10 = arith.constant 0 : i32
    %14 = arith.cmpi ne, %13, %c0_i32_10 : i32
    scf.if %14 {
      %c0_11 = arith.constant 0 : index
      %c0_12 = arith.constant 0 : index
      %15 = vector.load %arg7[%c0_11, %c0_12] : memref<2x32xf32, #tpu.memory_space<vmem>>, vector<2x32xf32>
      %c0_13 = arith.constant 0 : index
      %16 = memref.load %arg3[%c0_13] : memref<1xf32, #tpu.memory_space<smem>>
      %17 = vector.broadcast %16 : f32 to vector<2x32xf32>
      %18 = arith.mulf %15, %17 : vector<2x32xf32>
      %c0_14 = arith.constant 0 : index
      %c0_15 = arith.constant 0 : index
      %19 = vector.load %arg6[%c0_14, %c0_15] : memref<2x32xf32, #tpu.memory_space<vmem>>, vector<2x32xf32>
      tpu.vector_store %arg6[%c0_14, %c0_15], %18 {strides = array<i32>} : memref<2x32xf32, #tpu.memory_space<vmem>>, vector<2x32xf32>,
    } else {
    }
    return
  }
  func.func @transform_0(%arg0: i32, %arg1: i32, %arg2: i32, %arg3: memref<1xf32, #tpu.memory_space<smem>>) -> (i32, i32, i32) {
    %c0_i32 = arith.constant 0 : i32
    return %arg0, %arg2, %arg1 : i32, i32, i32
  }
  func.func @transform_1(%arg0: i32, %arg1: i32, %arg2: i32, %arg3: memref<1xf32, #tpu.memory_space<smem>>) -> (i32, i32) {
    %c0_i32 = arith.constant 0 : i32
    return %arg0, %arg2 : i32, i32
  }
  func.func @transform_2(%arg0: i32, %arg1: i32, %arg2: i32, %arg3: memref<1xf32, #tpu.memory_space<smem>>) -> (i32, i32) {
    %c0_i32 = arith.constant 0 : i32
    return %arg0, %arg1 : i32, i32
  }
}

</mosaic_0001>

<llo_original>
// kernel: tpu_custom_call.1
$region0: #{tpu_custom_call.1}
  #allocation0 [shape = 'u32[]', space=smem, size = 0x4, offset = 0x4, fixed_abs, tag = 'smem constant byte address 0x4 - core index']
  #allocation1 [shape = 'u32[144,128]{1,0:T(1,128)}', space=vmem, size = 0x12000, scoped, tag = 'internal scratch']
  #allocation2 [shape = 'f32[2,32]{1,0:T(2,128)}', space=vmem, size = 0x400, scoped, tag = 'scratch operand']
  #allocation3 [shape = 's32[1]{0}', space=sflag, size = 0x4, scoped, tag = 'scoped memory for tpu_custom_call.1']
  #allocation4 [shape = 'f32[1]{0:T(128)S(6)}', space=smem, size = 0x200, scoped, tag = 'prefetched SMEM operand 0']
  %s0 = inlined_call_operand.<no memory space> [shape: f32[1], index: 0, kind: input, shape index: {}]
  %s1 = inlined_call_operand.hbm [shape: f32[2,8,32], index: 1, kind: input, shape index: {}]
  %s2 = inlined_call_operand.vmem [shape: f32[2,8], index: 2, kind: input, shape index: {}]
  %s3 = inlined_call_operand.hbm [shape: f32[2,32], index: 3, kind: output, shape index: {}]
  %s4 = sld [smem:[#allocation0]]
  $region30: #{tpu_custom_call.1} parent=0
    _
  %s6 = ssub.s32 1, %s4
  %s7 = scalar_select 0, %s6, %s4
  %8 = sst [smem:[#allocation4]] %s0
  $region1: #{tpu_custom_call.1} parent=0
    #allocation5 [shape = 'u8[8192]{0}', space=vmem, size = 0x2000, scoped, tag = 'input window, operand 1, single buffered']
    #allocation6 [shape = 's32[1]{0}', space=sflag, size = 0x4, scoped, tag = 'scoped memory for tpu_custom_call.1']
    #allocation7 [shape = 's32[1]{0}', space=sflag, size = 0x4, scoped, tag = 'scoped memory for tpu_custom_call.1']
    #allocation8 [shape = 'u8[1024]{0}', space=vmem, size = 0x400, scoped, tag = 'output window, operand 0, single buffered']
    %9 = vsyncpa [#allocation6], 0
    %10 = vsyncpa [#allocation7], 0
    // Predicated region
    $region2: #{tpu_custom_call.1} parent=1 // pred_check
      _
    $region3: #{tpu_custom_call.1} parent=1 // pred_check_branch
      %12 = sbr.rel (0) target = $region5
    $region4: #{tpu_custom_call.1} parent=1 // pred_region
      %s14 = ssub.s32 256, 256
      %15 = vsyncadd [#allocation6], %s14
      %s16 = sshll.u32 [#allocation5], 4
      %s17 = int_to_ptr.vmem [resolvable:$true] %s16
      %22 = dma.hbm_to_vmem [thread:$0]  %s1, 256, %s17, [#allocation6], 128, 128, 8
    $region5: #{tpu_custom_call.1} parent=1 // pred_fallthru
      _
    // Predicated region
    $region6: #{tpu_custom_call.1} parent=1 // pred_check
      _
    $region7: #{tpu_custom_call.1} parent=1 // pred_check_branch
      %24 = sbr.rel (0) target = $region9
    $region8: #{tpu_custom_call.1} parent=1 // pred_region
      _
    $region9: #{tpu_custom_call.1} parent=1 // pred_fallthru
      _
    // Predicated region
    $region10: #{tpu_custom_call.1} parent=1 // pred_check
      _
    $region11: #{tpu_custom_call.1} parent=1 // pred_check_branch
      %26 = sbr.rel (0) target = $region13
    $region12: #{tpu_custom_call.1} parent=1 // pred_region
      %27 = dma.done [#allocation6], 256
    $region13: #{tpu_custom_call.1} parent=1 // pred_fallthru
      _
    %p28 = scmp.eq.s32.totalorder 0, 0
    // Predicated region
    $region14: #{tpu_custom_call.1} parent=1 // pred_check
      %p29 = pneg %p28
    $region15: #{tpu_custom_call.1} parent=1 // pred_check_branch
      %31 = sbr.rel (%p29) target = $region17
    $region16: #{tpu_custom_call.1} parent=1 // pred_region
      %vm32 = vcmask 254976
      %33 = vst.msk [vmem:[#allocation2] sm:$0x3] %vm32, 0.0
    $region17: #{tpu_custom_call.1} parent=1 // pred_fallthru
      _
    %v34 = vld [vmem:[#allocation5] sm:$0xff]
    %v35 = vld [vmem:[#allocation5 + $0x8] sm:$0xff]
    %v36 = vld [vmem:[%s2] sm:$0x3]
    %v37 = vlaneseq
    %v38 = vshrl.u32 %v37, 7
    %v39 = vsub.s32 0, %v38
    %v40 = vrot.slane %v36, %v39
    %42 = vbcast.lane.b32.xlu0 %v40, 256
    %v43 = vpop.permute.xlu0 %42
    %v44 = vlaneseq
    %v45 = vshrl.u32 %v44, 7
    %v46 = vsub.s32 1, %v45
    %v47 = vrot.slane %v36, %v46
    %49 = vbcast.lane.b32.xlu0 %v47, 256
    %v50 = vpop.permute.xlu0 %49
    %v51 = vld [vmem:[#allocation2] sm:$0x3]
    %v52 = vmul.f32 %v34, %v43
    %v53 = vmul.f32 %v35, %v50
    %vm54 = vcmask 261120
    %v55 = vsel %vm54, %v52, 0.0
    %v56 = vrot.slane %v55, 4
    %v57 = vadd.f32 %v55, %v56
    %v58 = vrot.slane %v57, 2
    %v59 = vadd.f32 %v57, %v58
    %v60 = vrot.slane %v59, 1
    %v61 = vadd.f32 %v59, %v60
    %v62 = vsel %vm54, %v53, 0.0
    %v63 = vrot.slane %v62, 4
    %v64 = vadd.f32 %v62, %v63
    %v65 = vrot.slane %v64, 2
    %v66 = vadd.f32 %v64, %v65
    %v67 = vrot.slane %v66, 1
    %v68 = vadd.f32 %v66, %v67
    %vm71 = vcmask 1041409
    %v72 = vsel %vm71, %v68, %v61
    %v74 = vadd.f32 %v51, %v72
    %vm75 = vcmask 254976
    %76 = vst.msk [vmem:[#allocation2] sm:$0x3] %vm75, %v74
    // Predicated region
    $region18: #{tpu_custom_call.1} parent=1 // pred_check
      %p77 = pneg %p28
    $region19: #{tpu_custom_call.1} parent=1 // pred_check_branch
      %79 = sbr.rel (%p77) target = $region21
    $region20: #{tpu_custom_call.1} parent=1 // pred_region
      %v80 = vld [vmem:[#allocation2] sm:$0x3]
      %s81 = sld [smem:[#allocation4]]
      %v82 = vstv %s81
      %v83 = vmul.f32 %v80, %v82
      %84 = vst.msk [vmem:[#allocation8] sm:$0x3] %vm75, %v83
    $region21: #{tpu_custom_call.1} parent=1 // pred_fallthru
      _
    // Predicated region
    $region22: #{tpu_custom_call.1} parent=1 // pred_check
      _
    $region23: #{tpu_custom_call.1} parent=1 // pred_check_branch
      %86 = sbr.rel (0) target = $region25
    $region24: #{tpu_custom_call.1} parent=1 // pred_region
      %s88 = ssub.s32 32, 32
      %89 = vsyncadd [#allocation7], %s88
      %s91 = sshll.u32 [#allocation8], 4
      %s92 = int_to_ptr.vmem [resolvable:$true] %s91
      %94 = dma.vmem_to_hbm [thread:$0]  %s92, 32, %s3, [#allocation7]
    $region25: #{tpu_custom_call.1} parent=1 // pred_fallthru
      _
    // Predicated region
    $region26: #{tpu_custom_call.1} parent=1 // pred_check
      _
    $region27: #{tpu_custom_call.1} parent=1 // pred_check_branch
      %96 = sbr.rel (0) target = $region29
    $region28: #{tpu_custom_call.1} parent=1 // pred_region
      %97 = dma.done [#allocation7], 32
    $region29: #{tpu_custom_call.1} parent=1 // pred_fallthru
      _
    %98 = vsyncpa [#allocation6], 1
    %99 = vsyncpa [#allocation7], 1

</llo_original>
